<compile_context>
chip_gen: v7x
topology: tpu7x:2x2x1
jax: 0.10.0
libtpu: 0.0.40
codegen_flags: <defaults>
</compile_context>

<pallas_src>
import functools

import jax
import jax.numpy as jnp
import numpy as np
from jax.experimental import pallas as pl
from jax.experimental.pallas import tpu as pltpu

_TILE_CAP_BYTES = 4 * 1024 * 1024   # target per-step output tile (~4 MiB)
_ROW_CAP_BYTES = 8 * 1024 * 1024    # per-batch-element cap before row-blocking


def _kron_kernel(a_ref, b_ref, o_ref, *, BN, Ah, Aw, Bh, Bw, AhB,
                 lane_concat, unroll_batch):
    # a_ref: (N*Ah*Aw,) 32-bit in SMEM (whole parameter, scalar-path reads)
    # b_ref: (BN, Bh, Bw) VMEM block for this grid step
    # o_ref: (BN, AhB*Bh, Aw*Bw) VMEM block for this grid step
    g = pl.program_id(0)                       # batch-block index
    r = pl.program_id(1)                       # row-block index over Ah
    blk_base = g * (BN * Ah * Aw) + r * (AhB * Aw)

    def emit(n):
        b = b_ref[n]                           # (Bh, Bw) vector load
        a_base = blk_base + n * (Ah * Aw)
        for i in range(AhB):                   # small static unroll
            row_off = a_base + i * Aw
            if lane_concat:
                # scalar (SMEM) * vector broadcasts, concatenated into one
                # lane-dense (Bh, Aw*Bw) slab, stored immediately.
                row = jnp.concatenate(
                    [a_ref[row_off + j] * b for j in range(Aw)], axis=-1)
                o_ref[n, pl.ds(i * Bh, Bh), :] = row.astype(o_ref.dtype)
            else:
                # Bw not 128-aligned: per-chunk masked stores are cheaper
                # than lane-shuffling concatenations.
                for j in range(Aw):
                    o_ref[n, pl.ds(i * Bh, Bh), pl.ds(j * Bw, Bw)] = (
                        a_ref[row_off + j] * b).astype(o_ref.dtype)

    if unroll_batch:
        for n in range(BN):                    # static unroll: full scheduler
            emit(n)                            # visibility across batch elems
    else:
        def body(n, carry):
            emit(n)
            return carry
        jax.lax.fori_loop(0, BN, body, 0)


def _choose_blocks(N, Ah, Aw, Bh, Bw, itemsize):
    """Pick (BN, AhB): batch elements per step and Ah-rows per step."""
    per_elem = Ah * Bh * Aw * Bw * itemsize
    # Row-block Ah only when a single batch element's output tile would blow
    # past ~8 MiB (keeps double-buffered blocks inside v7x's 64 MiB VMEM).
    # Requires sublane-aligned Bh so partial row blocks stay (8,128)-legal.
    AhB = Ah
    if per_elem > _ROW_CAP_BYTES and Ah > 1 and Bh % 8 == 0:
        AhB = 1
        for d in range(2, Ah + 1):
            if Ah % d == 0 and d * Bh * Aw * Bw * itemsize <= _ROW_CAP_BYTES:
                AhB = d
    tile_bytes = AhB * Bh * Aw * Bw * itemsize
    cap_bn = max(1, _TILE_CAP_BYTES // max(tile_bytes, 1))
    divs = [d for d in range(1, N + 1) if N % d == 0 and d <= cap_bn] or [1]
    grid_r = Ah // AhB
    # v7x shards the parallel grid across 2 TensorCores: prefer an even total
    # step count (no idle-core tail step), then >=2 steps, then biggest block.
    even = [d for d in divs if ((N // d) * grid_r) % 2 == 0]
    multi = [d for d in divs if (N // d) * grid_r >= 2]
    if even:
        BN = max(even)
    elif multi:
        BN = max(multi)
    else:
        BN = max(divs)
    return BN, AhB


def kronecker_product(A, B, *, out_dtype=None, batch_block=None, row_block=None):
    """Batched Kronecker product via a Pallas TPU kernel.

    A: (N, Ah, Aw) parameter, B: (N, Bh, Bw) input.
    Returns (N, Ah*Bh, Aw*Bw); dtype defaults to promotion of A and B
    (matching PyTorch), overridable via out_dtype for narrower writeback.
    """
    N, Ah, Aw = A.shape
    Nb, Bh, Bw = B.shape
    assert N == Nb, "batch dims of A and B must match"

    if out_dtype is None:
        out_dtype = jnp.result_type(A.dtype, B.dtype)
    itemsize = jnp.dtype(out_dtype).itemsize

    BN, AhB = _choose_blocks(N, Ah, Aw, Bh, Bw, itemsize)
    if batch_block is not None:
        BN = batch_block
    if row_block is not None:
        AhB = row_block
    assert N % BN == 0, "batch block must divide N"
    assert Ah % AhB == 0, "row block must divide Ah"

    # A scalars live on the scalar path: SMEM holds 32-bit words, so widen
    # narrow dtypes once here (Model already stores A as f32).
    if jnp.dtype(A.dtype).itemsize != 4:
        A = A.astype(jnp.float32)
    A_flat = A.reshape(N * Ah * Aw)
    # NOTE: whole flattened A stays resident in SMEM (pads to
    # next_pow2(4*N*Ah*Aw) bytes) — ample for typical Kronecker parameter
    # sizes. TODO(synk): block A into SMEM per grid step for very large
    # N*Ah*Aw to avoid the SMEM capacity cliff.

    lane_concat = (Bw % 128 == 0)
    unroll_batch = BN <= 8

    out_block = (BN, AhB * Bh, Aw * Bw)
    b_block = (BN, Bh, Bw)
    out_block_bytes = BN * AhB * Bh * Aw * Bw * itemsize
    b_block_bytes = BN * Bh * Bw * jnp.dtype(B.dtype).itemsize
    # Double-buffered blocks + slack; at least 32 MiB so v5e's 16 MiB scoped
    # default never clips the chosen tiles. Capped at 128 MiB.
    vmem_limit = int(min(128 * 1024 * 1024,
                         max(32 * 1024 * 1024,
                             2 * (out_block_bytes + b_block_bytes) + (4 << 20))))

    kernel = functools.partial(
        _kron_kernel, BN=BN, Ah=Ah, Aw=Aw, Bh=Bh, Bw=Bw, AhB=AhB,
        lane_concat=lane_concat, unroll_batch=unroll_batch)

    return pl.pallas_call(
        kernel,
        out_shape=jax.ShapeDtypeStruct((N, Ah * Bh, Aw * Bw), out_dtype),
        grid_spec=pltpu.PrefetchScalarGridSpec(
            num_scalar_prefetch=0,
            grid=(N // BN, Ah // AhB),
            in_specs=[
                # Whole (small) A parameter resident in SMEM: scalar-path
                # reads, no per-step A DMA.
                pl.BlockSpec(memory_space=pltpu.MemorySpace.SMEM),
                # B block index is independent of the row axis -> stays
                # resident across r steps (no re-DMA).
                pl.BlockSpec(b_block, lambda g, r: (g, 0, 0)),
            ],
            out_specs=pl.BlockSpec(out_block, lambda g, r: (g, r, 0)),
        ),
        compiler_params=pltpu.CompilerParams(
            dimension_semantics=("parallel", "parallel"),
            vmem_limit_bytes=vmem_limit),
    )(A_flat, B)


class Model:
    """JAX equivalent of the PyTorch Model: holds parameter A, forward(B) = kron(A, B)."""

    def __init__(self, A_shape, B_shape, key):
        self.A_shape = tuple(A_shape)
        self.B_shape = tuple(B_shape)
        # torch.randint(100, size=A_shape).float() -> ints in [0, 100), cast once.
        self.A = jax.random.randint(key, self.A_shape, 0, 100).astype(jnp.float32)

    def __call__(self, B):
        return kronecker_product(self.A, B)


if __name__ == "__main__":
    key = jax.random.PRNGKey(0)
    k_a, k_b = jax.random.split(key)

    # Small, lane-aligned shapes consistent with the module's batched 3-D convention.
    A_shape = (2, 3, 4)      # (N, Ah, Aw)
    B_shape = (2, 8, 128)    # (N, Bh, Bw)

    model = Model(A_shape, B_shape, k_a)
    B = jax.random.normal(k_b, B_shape, dtype=jnp.float32)

    out = model(B)
    out = jax.block_until_ready(out)

    # Reference: per-batch Kronecker product.
    ref = jnp.stack([jnp.kron(model.A[n], B[n]) for n in range(A_shape[0])])
    assert out.shape == (A_shape[0], A_shape[1] * B_shape[1], A_shape[2] * B_shape[2])
    np.testing.assert_allclose(np.asarray(out), np.asarray(ref), rtol=1e-6, atol=1e-6)

    print("KERNEL_OK")
</pallas_src>

<mosaic_0001>
module attributes {stable_mosaic.version = 11 : i64} {
  func.func @_kron_kernel(%arg0: i32, %arg1: i32, %arg2: memref<24xf32, #tpu.memory_space<smem>>, %arg3: memref<1x8x128xf32, #tpu.memory_space<vmem>>, %arg4: memref<1x24x512xf32, #tpu.memory_space<vmem>>) attributes {dimension_semantics = [#tpu.dimension_semantics<parallel>, #tpu.dimension_semantics<parallel>], iteration_bounds = array<i64: 2, 1>, scalar_prefetch = 0 : i64, scratch_operands = 0 : i64, tpu.core_type = #tpu.core_type<tc>, window_params = [{transform_indices = @transform_0, window_bounds = array<i64: 24>}, {transform_indices = @transform_1, window_bounds = array<i64: 1, 8, 128>}, {transform_indices = @transform_2, window_bounds = array<i64: 1, 24, 512>}]} {
    %c12_i32 = arith.constant 12 : i32
    %0 = arith.muli %arg0, %c12_i32 : i32
    %c12_i32_0 = arith.constant 12 : i32
    %1 = arith.muli %arg1, %c12_i32_0 : i32
    %2 = arith.addi %0, %1 : i32
    %c0 = arith.constant 0 : index
    %c0_1 = arith.constant 0 : index
    %c0_2 = arith.constant 0 : index
    %3 = vector.load %arg3[%c0, %c0_1, %c0_2] : memref<1x8x128xf32, #tpu.memory_space<vmem>>, vector<1x8x128xf32>
    %4 = vector.shape_cast %3 : vector<1x8x128xf32> to vector<8x128xf32>
    %c0_i32 = arith.constant 0 : i32
    %5 = arith.addi %2, %c0_i32 : i32
    %c0_i32_3 = arith.constant 0 : i32
    %6 = arith.addi %5, %c0_i32_3 : i32
    %c0_i32_4 = arith.constant 0 : i32
    %7 = arith.addi %6, %c0_i32_4 : i32
    %8 = arith.index_cast %7 : i32 to index
    %9 = memref.load %arg2[%8] : memref<24xf32, #tpu.memory_space<smem>>
    %10 = vector.broadcast %9 : f32 to vector<8x128xf32>
    %11 = arith.mulf %10, %4 : vector<8x128xf32>
    %c1_i32 = arith.constant 1 : i32
    %12 = arith.addi %6, %c1_i32 : i32
    %13 = arith.index_cast %12 : i32 to index
    %14 = memref.load %arg2[%13] : memref<24xf32, #tpu.memory_space<smem>>
    %15 = vector.broadcast %14 : f32 to vector<8x128xf32>
    %16 = arith.mulf %15, %4 : vector<8x128xf32>
    %c2_i32 = arith.constant 2 : i32
    %17 = arith.addi %6, %c2_i32 : i32
    %18 = arith.index_cast %17 : i32 to index
    %19 = memref.load %arg2[%18] : memref<24xf32, #tpu.memory_space<smem>>
    %20 = vector.broadcast %19 : f32 to vector<8x128xf32>
    %21 = arith.mulf %20, %4 : vector<8x128xf32>
    %c3_i32 = arith.constant 3 : i32
    %22 = arith.addi %6, %c3_i32 : i32
    %23 = arith.index_cast %22 : i32 to index
    %24 = memref.load %arg2[%23] : memref<24xf32, #tpu.memory_space<smem>>
    %25 = vector.broadcast %24 : f32 to vector<8x128xf32>
    %26 = arith.mulf %25, %4 : vector<8x128xf32>
    %27 = tpu.concatenate %11, %16, %21, %26 in 1 : vector<8x128xf32>, vector<8x128xf32>, vector<8x128xf32>, vector<8x128xf32> -> vector<8x512xf32>
    %c0_5 = arith.constant 0 : index
    %c0_6 = arith.constant 0 : index
    %c0_7 = arith.constant 0 : index
    %28 = vector.load %arg4[%c0_5, %c0_6, %c0_7] : memref<1x24x512xf32, #tpu.memory_space<vmem>>, vector<1x8x512xf32>
    %29 = vector.shape_cast %28 : vector<1x8x512xf32> to vector<8x512xf32>
    %30 = vector.shape_cast %27 : vector<8x512xf32> to vector<1x8x512xf32>
    tpu.vector_store %arg4[%c0_5, %c0_6, %c0_7], %30 {strides = array<i32>} : memref<1x24x512xf32, #tpu.memory_space<vmem>>, vector<1x8x512xf32>,
    %c4_i32 = arith.constant 4 : i32
    %31 = arith.addi %5, %c4_i32 : i32
    %c0_i32_8 = arith.constant 0 : i32
    %32 = arith.addi %31, %c0_i32_8 : i32
    %33 = arith.index_cast %32 : i32 to index
    %34 = memref.load %arg2[%33] : memref<24xf32, #tpu.memory_space<smem>>
    %35 = vector.broadcast %34 : f32 to vector<8x128xf32>
    %36 = arith.mulf %35, %4 : vector<8x128xf32>
    %c1_i32_9 = arith.constant 1 : i32
    %37 = arith.addi %31, %c1_i32_9 : i32
    %38 = arith.index_cast %37 : i32 to index
    %39 = memref.load %arg2[%38] : memref<24xf32, #tpu.memory_space<smem>>
    %40 = vector.broadcast %39 : f32 to vector<8x128xf32>
    %41 = arith.mulf %40, %4 : vector<8x128xf32>
    %c2_i32_10 = arith.constant 2 : i32
    %42 = arith.addi %31, %c2_i32_10 : i32
    %43 = arith.index_cast %42 : i32 to index
    %44 = memref.load %arg2[%43] : memref<24xf32, #tpu.memory_space<smem>>
    %45 = vector.broadcast %44 : f32 to vector<8x128xf32>
    %46 = arith.mulf %45, %4 : vector<8x128xf32>
    %c3_i32_11 = arith.constant 3 : i32
    %47 = arith.addi %31, %c3_i32_11 : i32
    %48 = arith.index_cast %47 : i32 to index
    %49 = memref.load %arg2[%48] : memref<24xf32, #tpu.memory_space<smem>>
    %50 = vector.broadcast %49 : f32 to vector<8x128xf32>
    %51 = arith.mulf %50, %4 : vector<8x128xf32>
    %52 = tpu.concatenate %36, %41, %46, %51 in 1 : vector<8x128xf32>, vector<8x128xf32>, vector<8x128xf32>, vector<8x128xf32> -> vector<8x512xf32>
    %c0_12 = arith.constant 0 : index
    %c8 = arith.constant 8 : index
    %c0_13 = arith.constant 0 : index
    %53 = vector.load %arg4[%c0_12, %c8, %c0_13] : memref<1x24x512xf32, #tpu.memory_space<vmem>>, vector<1x8x512xf32>
    %54 = vector.shape_cast %53 : vector<1x8x512xf32> to vector<8x512xf32>
    %55 = vector.shape_cast %52 : vector<8x512xf32> to vector<1x8x512xf32>
    tpu.vector_store %arg4[%c0_12, %c8, %c0_13], %55 {strides = array<i32>} : memref<1x24x512xf32, #tpu.memory_space<vmem>>, vector<1x8x512xf32>,
    %c8_i32 = arith.constant 8 : i32
    %56 = arith.addi %5, %c8_i32 : i32
    %c0_i32_14 = arith.constant 0 : i32
    %57 = arith.addi %56, %c0_i32_14 : i32
    %58 = arith.index_cast %57 : i32 to index
    %59 = memref.load %arg2[%58] : memref<24xf32, #tpu.memory_space<smem>>
    %60 = vector.broadcast %59 : f32 to vector<8x128xf32>
    %61 = arith.mulf %60, %4 : vector<8x128xf32>
    %c1_i32_15 = arith.constant 1 : i32
    %62 = arith.addi %56, %c1_i32_15 : i32
    %63 = arith.index_cast %62 : i32 to index
    %64 = memref.load %arg2[%63] : memref<24xf32, #tpu.memory_space<smem>>
    %65 = vector.broadcast %64 : f32 to vector<8x128xf32>
    %66 = arith.mulf %65, %4 : vector<8x128xf32>
    %c2_i32_16 = arith.constant 2 : i32
    %67 = arith.addi %56, %c2_i32_16 : i32
    %68 = arith.index_cast %67 : i32 to index
    %69 = memref.load %arg2[%68] : memref<24xf32, #tpu.memory_space<smem>>
    %70 = vector.broadcast %69 : f32 to vector<8x128xf32>
    %71 = arith.mulf %70, %4 : vector<8x128xf32>
    %c3_i32_17 = arith.constant 3 : i32
    %72 = arith.addi %56, %c3_i32_17 : i32
    %73 = arith.index_cast %72 : i32 to index
    %74 = memref.load %arg2[%73] : memref<24xf32, #tpu.memory_space<smem>>
    %75 = vector.broadcast %74 : f32 to vector<8x128xf32>
    %76 = arith.mulf %75, %4 : vector<8x128xf32>
    %77 = tpu.concatenate %61, %66, %71, %76 in 1 : vector<8x128xf32>, vector<8x128xf32>, vector<8x128xf32>, vector<8x128xf32> -> vector<8x512xf32>
    %c0_18 = arith.constant 0 : index
    %c16 = arith.constant 16 : index
    %c0_19 = arith.constant 0 : index
    %78 = vector.load %arg4[%c0_18, %c16, %c0_19] : memref<1x24x512xf32, #tpu.memory_space<vmem>>, vector<1x8x512xf32>
    %79 = vector.shape_cast %78 : vector<1x8x512xf32> to vector<8x512xf32>
    %80 = vector.shape_cast %77 : vector<8x512xf32> to vector<1x8x512xf32>
    tpu.vector_store %arg4[%c0_18, %c16, %c0_19], %80 {strides = array<i32>} : memref<1x24x512xf32, #tpu.memory_space<vmem>>, vector<1x8x512xf32>,
    return
  }
  func.func @transform_0(%arg0: i32, %arg1: i32) -> i32 {
    %c0_i32 = arith.constant 0 : i32
    %c0_i32_0 = arith.constant 0 : i32
    return %c0_i32 : i32
  }
  func.func @transform_1(%arg0: i32, %arg1: i32) -> (i32, i32, i32) {
    %c0_i32 = arith.constant 0 : i32
    %c0_i32_0 = arith.constant 0 : i32
    %c0_i32_1 = arith.constant 0 : i32
    return %arg0, %c0_i32, %c0_i32_0 : i32, i32, i32
  }
  func.func @transform_2(%arg0: i32, %arg1: i32) -> (i32, i32, i32) {
    %c0_i32 = arith.constant 0 : i32
    %c0_i32_0 = arith.constant 0 : i32
    return %arg0, %arg1, %c0_i32 : i32, i32, i32
  }
}

</mosaic_0001>

<llo_original>
// kernel: tpu_custom_call.1
$region0: #{tpu_custom_call.1}
  #allocation0 [shape = 'u32[]', space=smem, size = 0x4, offset = 0x4, fixed_abs, tag = 'smem constant byte address 0x4 - core index']
  #allocation1 [shape = 'u32[144,128]{1,0:T(1,128)}', space=vmem, size = 0x12000, scoped, tag = 'internal scratch']
  %s0 = inlined_call_operand.hbm [shape: f32[24], index: 0, kind: input, shape index: {}]
  %s1 = inlined_call_operand.hbm [shape: f32[2,8,128], index: 1, kind: input, shape index: {}]
  %s2 = inlined_call_operand.hbm [shape: f32[2,24,512], index: 2, kind: output, shape index: {}]
  %s3 = sld [smem:[#allocation0]]
  $region49: #{tpu_custom_call.1} parent=0
    _
  %s5 = ssub.s32 1, %s3
  %s6 = scalar_select 0, %s5, %s3
  $region1: #{tpu_custom_call.1} parent=0
    #allocation2 [shape = 'u8[512]{0}', space=smem, size = 0x200, scoped, tag = 'input window, operand 0, single buffered']
    #allocation3 [shape = 's32[2]{0}', space=sflag, size = 0x8, scoped, tag = 'scoped memory for tpu_custom_call.1']
    #allocation4 [shape = 's32[2]{0}', space=sflag, size = 0x8, scoped, tag = 'scoped memory for tpu_custom_call.1']
    #allocation5 [shape = 's32[2]{0}', space=sflag, size = 0x8, scoped, tag = 'scoped memory for tpu_custom_call.1']
    #allocation6 [shape = 'u8[8192]{0}', space=vmem, size = 0x2000, scoped, tag = 'input window, operand 1']
    #allocation7 [shape = 'u8[98304]{0}', space=vmem, size = 0x18000, scoped, tag = 'output window, operand 0']
    %7 = vsyncpa [#allocation5], 0
    %8 = vsyncpa [#allocation3], 0
    %s9 = scalar_lea.sflag [#allocation3], 1
    %10 = vsyncpa %s9, 0
    %11 = vsyncpa [#allocation4], 0
    %s12 = scalar_lea.sflag [#allocation4], 1
    %13 = vsyncpa %s12, 0
    loop: start=0, step=1, limit=4
    $region2: #{tpu_custom_call.1} parent=1 // loop_pre_header
      _
    $region3: #{tpu_custom_call.1} parent=1 // loop_header
      %s15 = sphi 0, %s19
      %p16 = scmp.ge.s32.totalorder %s15, 4
      %s22 = sphi 0, %s34
      %s23 = sphi 0, %s30
      %s24 = sphi 0, %s22
      %s25 = sphi 0, %s23
      %s26 = sphi 0, %s24
      %s27 = sphi 0, %s25
      %s35 = sphi 0, %s35
      %s37 = sphi 0, %s35
      %s38 = sphi 0, %s37
      %s52 = sphi 0, %s38
      %s58 = sphi 0, %s60
      %s61 = sphi 0, %s58
      %s62 = sphi 0, %s61
      %s78 = sphi 0, %s62
      %s86 = sphi 0, %s88
      %s89 = sphi 0, %s86
      %s90 = sphi 0, %s89
      %s106 = sphi 0, %s90
    $region4: #{tpu_custom_call.1} parent=1 // loop_header_branch
      %18 = sbr.rel (%p16) target = $region8
    $region5: #{tpu_custom_call.1} parent=1 // loop_body
      %s20 = ssub.s32 %s15, 1
      %s21 = ssub.s32 %s15, 2
      %s28 = sadd.s32 1, %s23
      %p29 = scmp.ge.s32.totalorder %s28, 1
      %s30 = scalar_select %p29, 0, %s28
      %s31 = sadd.s32 1, %s22
      %s32 = scalar_select %p29, %s31, %s22
      %p33 = scmp.ge.s32.totalorder %s32, 2
      %s34 = scalar_select %p33, 0, %s32
      %s36 = sadd.s32 %s35, 1
      %p39 = scmp.eq.s32.totalorder %s15, 1
      %p40 = scmp.ne.s32.totalorder %s35, %s37
      %p41 = scmp.eq.s32.totalorder %s15, 0
      %p42 = por %p40, %p41
      %p43 = scmp.ne.s32.totalorder %s35, %s37
      %p44 = scmp.eq.s32.totalorder %s20, 1
      %p45 = por %p43, %p44
      %p46 = scmp.ne.s32.totalorder %s37, %s38
      %p47 = scmp.eq.s32.totalorder %s20, 0
      %p48 = por %p46, %p47
      %p49 = scmp.ne.s32.totalorder %s37, %s38
      %p50 = scmp.eq.s32.totalorder %s21, 1
      %p51 = por %p49, %p50
      %p53 = scmp.ne.s32.totalorder %s38, %s52
      %p54 = scmp.eq.s32.totalorder %s21, 0
      %p55 = por %p53, %p54
      %s56 = ssub.s32 %s22, %s34
      %p57 = scmp.eq.s32.totalorder %s56, 0
      %s59 = sadd.s32 %s58, 1
      %s60 = scalar_select %p57, %s58, %s59
      %p63 = pneg %p57
      %p64 = scmp.eq.s32.totalorder %s15, 1
      %p65 = por %p63, %p64
      %p66 = scmp.ne.s32.totalorder %s58, %s61
      %p67 = scmp.eq.s32.totalorder %s15, 0
      %p68 = por %p66, %p67
      %p69 = scmp.ne.s32.totalorder %s58, %s61
      %p70 = scmp.eq.s32.totalorder %s20, 1
      %p71 = por %p69, %p70
      %p72 = scmp.ne.s32.totalorder %s61, %s62
      %p73 = scmp.eq.s32.totalorder %s20, 0
      %p74 = por %p72, %p73
      %p75 = scmp.ne.s32.totalorder %s61, %s62
      %p76 = scmp.eq.s32.totalorder %s21, 1
      %p77 = por %p75, %p76
      %p79 = scmp.ne.s32.totalorder %s62, %s78
      %p80 = scmp.eq.s32.totalorder %s21, 0
      %p81 = por %p79, %p80
      %s82 = ssub.s32 %s22, %s34
      %s83 = ssub.s32 %s23, %s30
      %s84 = sor.u32 %s82, %s83
      %p85 = scmp.eq.s32.totalorder %s84, 0
      %s87 = sadd.s32 %s86, 1
      %s88 = scalar_select %p85, %s86, %s87
      %p91 = pneg %p85
      %p92 = scmp.eq.s32.totalorder %s15, 1
      %p93 = por %p91, %p92
      %p94 = scmp.ne.s32.totalorder %s86, %s89
      %p95 = scmp.eq.s32.totalorder %s15, 0
      %p96 = por %p94, %p95
      %p97 = scmp.ne.s32.totalorder %s86, %s89
      %p98 = scmp.eq.s32.totalorder %s20, 1
      %p99 = por %p97, %p98
      %p100 = scmp.ne.s32.totalorder %s89, %s90
      %p101 = scmp.eq.s32.totalorder %s20, 0
      %p102 = por %p100, %p101
      %p103 = scmp.ne.s32.totalorder %s89, %s90
      %p104 = scmp.eq.s32.totalorder %s21, 1
      %p105 = por %p103, %p104
      %p107 = scmp.ne.s32.totalorder %s90, %s106
      %p108 = scmp.eq.s32.totalorder %s21, 0
      %p109 = por %p107, %p108
      %p110 = scmp.le.s32.totalorder 1, %s15
      %p111 = scmp.lt.s32.totalorder %s15, 3
      %p112 = pnand %p110, %p111
      %p113 = pneg %p112
      // Predicated region
      $region9: #{tpu_custom_call.1} parent=5 // pred_check
        _
      $region10: #{tpu_custom_call.1} parent=5 // pred_check_branch
        %115 = sbr.rel (%p112) target = $region12
      $region11: #{tpu_custom_call.1} parent=5 // pred_region
        %s116 = ssub.s32 %s15, 1
        // Predicated region
        $region13: #{tpu_custom_call.1} parent=11 // pred_check
          %p117 = pneg %p48
        $region14: #{tpu_custom_call.1} parent=11 // pred_check_branch
          %119 = sbr.rel (%p117) target = $region16
        $region15: #{tpu_custom_call.1} parent=11 // pred_region
          %s121 = ssub.s32 16, 16
          %122 = vsyncadd [#allocation5], %s121
          %125 = dma.hbm_to_smem %s0, 16, [#allocation2], [#allocation5]
        $region16: #{tpu_custom_call.1} parent=11 // pred_fallthru
          _
      $region12: #{tpu_custom_call.1} parent=5 // pred_fallthru
        _
      %p126 = scmp.lt.s32.totalorder %s15, 2
      // Predicated region
      $region17: #{tpu_custom_call.1} parent=5 // pred_check
        %p127 = pneg %p126
      $region18: #{tpu_custom_call.1} parent=5 // pred_check_branch
        %129 = sbr.rel (%p127) target = $region20
      $region19: #{tpu_custom_call.1} parent=5 // pred_region
        // Predicated region
        $region21: #{tpu_custom_call.1} parent=19 // pred_check
          %p130 = pneg %p68
        $region22: #{tpu_custom_call.1} parent=19 // pred_check_branch
          %132 = sbr.rel (%p130) target = $region24
        $region23: #{tpu_custom_call.1} parent=19 // pred_region
          %s133 = sand.u32 %s58, 1
          %s134 = scalar_lea.sflag [#allocation3], %s133
          %s135 = sand.u32 %s58, 1
          %s136 = smul.addr %s135, 8
          %s137 = scalar_lea.vmem [#allocation6], %s136
          %s139 = ssub.s32 128, 128
          %140 = vsyncadd %s134, %s139
          %s141 = smul.addr %s22, 128
          %s142 = scalar_lea.hbm %s1, %s141
          %s144 = sshll.u32 %s137, 4
          %s145 = int_to_ptr.vmem [resolvable:$true] %s144
          %147 = dma.hbm_to_vmem [thread:$0]  %s142, 128, %s145, %s134
        $region24: #{tpu_custom_call.1} parent=19 // pred_fallthru
          _
      $region20: #{tpu_custom_call.1} parent=5 // pred_fallthru
        _
      %p148 = scmp.le.s32.totalorder 1, %s15
      %p149 = scmp.lt.s32.totalorder %s15, 3
      %p150 = pnand %p148, %p149
      %p151 = pneg %p150
      // Predicated region
      $region25: #{tpu_custom_call.1} parent=5 // pred_check
        _
      $region26: #{tpu_custom_call.1} parent=5 // pred_check_branch
        %153 = sbr.rel (%p150) target = $region28
      $region27: #{tpu_custom_call.1} parent=5 // pred_region
        %s154 = ssub.s32 %s15, 1
        // Predicated region
        $region29: #{tpu_custom_call.1} parent=27 // pred_check
          %p155 = pneg %p48
        $region30: #{tpu_custom_call.1} parent=27 // pred_check_branch
          %157 = sbr.rel (%p155) target = $region32
        $region31: #{tpu_custom_call.1} parent=27 // pred_region
          %158 = dma.done [#allocation5], 16
        $region32: #{tpu_custom_call.1} parent=27 // pred_fallthru
          _
        %s159 = sand.u32 %s61, 1
        %s160 = scalar_lea.sflag [#allocation3], %s159
        %s161 = sand.u32 %s61, 1
        %s162 = smul.addr %s161, 8
        %s163 = scalar_lea.vmem [#allocation6], %s162
        // Predicated region
        $region33: #{tpu_custom_call.1} parent=27 // pred_check
          %p164 = pneg %p74
        $region34: #{tpu_custom_call.1} parent=27 // pred_check_branch
          %166 = sbr.rel (%p164) target = $region36
        $region35: #{tpu_custom_call.1} parent=27 // pred_region
          %167 = dma.done %s160, 128
        $region36: #{tpu_custom_call.1} parent=27 // pred_fallthru
          _
        %168 = sfence
        %p169 = pneg %p48
        %p170 = pneg %p45
        %s171 = sand.u32 %s61, 1
        %s172 = scalar_lea.sflag [#allocation3], %s171
        %s173 = sand.u32 %s61, 1
        %s174 = smul.addr %s173, 8
        %s175 = scalar_lea.vmem [#allocation6], %s174
        %p176 = pneg %p74
        %p177 = pneg %p71
        %p178 = pneg %p102
        %p179 = pneg %p99
        %s180 = sand.u32 %s89, 1
        %s181 = scalar_lea.sflag [#allocation4], %s180
        %s182 = sand.u32 %s89, 1
        %s183 = smul.addr %s182, 96
        %s184 = scalar_lea.vmem [#allocation7], %s183
        %s185 = smul.u32 3, %s25
        %s186 = smul.u32 %s24, 12
        %s187 = smul.u32 %s25, 12
        %s188 = sadd.s32 %s186, %s187
        %v189 = vld [vmem:[%s163] sm:$0xff]
        %s190 = sld [smem:[#allocation2 + %s188]]
        %v191 = vstv %s190
        %v192 = vmul.f32 %v191, %v189
        %s193 = sadd.s32 %s188, 1
        %s194 = sld [smem:[#allocation2 + %s193]]
        %v195 = vstv %s194
        %v196 = vmul.f32 %v195, %v189
        %s197 = sadd.s32 %s188, 2
        %s198 = sld [smem:[#allocation2 + %s197]]
        %v199 = vstv %s198
        %v200 = vmul.f32 %v199, %v189
        %s201 = sadd.s32 %s188, 3
        %s202 = sld [smem:[#allocation2 + %s201]]
        %v203 = vstv %s202
        %v204 = vmul.f32 %v203, %v189
        %205 = vst [vmem:[%s184] sm:$0xff] %v192
        %206 = vst [vmem:[%s184 + $0x8] sm:$0xff] %v196
        %207 = vst [vmem:[%s184 + $0x10] sm:$0xff] %v200
        %208 = vst [vmem:[%s184 + $0x18] sm:$0xff] %v204
        %s209 = sadd.s32 %s188, 4
        %s210 = sld [smem:[#allocation2 + %s209]]
        %v211 = vstv %s210
        %v212 = vmul.f32 %v211, %v189
        %s213 = sadd.s32 %s188, 5
        %s214 = sld [smem:[#allocation2 + %s213]]
        %v215 = vstv %s214
        %v216 = vmul.f32 %v215, %v189
        %s217 = sadd.s32 %s188, 6
        %s218 = sld [smem:[#allocation2 + %s217]]
        %v219 = vstv %s218
        %v220 = vmul.f32 %v219, %v189
        %s221 = sadd.s32 %s188, 7
        %s222 = sld [smem:[#allocation2 + %s221]]
        %v223 = vstv %s222
        %v224 = vmul.f32 %v223, %v189
        %225 = vst [vmem:[%s184 + $0x20] sm:$0xff] %v212
        %226 = vst [vmem:[%s184 + $0x28] sm:$0xff] %v216
        %227 = vst [vmem:[%s184 + $0x30] sm:$0xff] %v220
        %228 = vst [vmem:[%s184 + $0x38] sm:$0xff] %v224
        %s229 = sadd.s32 %s188, 8
        %s230 = sld [smem:[#allocation2 + %s229]]
        %v231 = vstv %s230
        %v232 = vmul.f32 %v231, %v189
        %s233 = sadd.s32 %s188, 9
        %s234 = sld [smem:[#allocation2 + %s233]]
        %v235 = vstv %s234
        %v236 = vmul.f32 %v235, %v189
        %s237 = sadd.s32 %s188, 10
        %s238 = sld [smem:[#allocation2 + %s237]]
        %v239 = vstv %s238
        %v240 = vmul.f32 %v239, %v189
        %s241 = sadd.s32 %s188, 11
        %s242 = sld [smem:[#allocation2 + %s241]]
        %v243 = vstv %s242
        %v244 = vmul.f32 %v243, %v189
        %245 = vst [vmem:[%s184 + $0x40] sm:$0xff] %v232
        %246 = vst [vmem:[%s184 + $0x48] sm:$0xff] %v236
        %247 = vst [vmem:[%s184 + $0x50] sm:$0xff] %v240
        %248 = vst [vmem:[%s184 + $0x58] sm:$0xff] %v244
        %s249 = sand.u32 %s89, 1
        %s250 = scalar_lea.sflag [#allocation4], %s249
        %s251 = sand.u32 %s89, 1
        %s252 = smul.addr %s251, 96
        %s253 = scalar_lea.vmem [#allocation7], %s252
        // Predicated region
        $region37: #{tpu_custom_call.1} parent=27 // pred_check
          %p254 = pneg %p99
        $region38: #{tpu_custom_call.1} parent=27 // pred_check_branch
          %256 = sbr.rel (%p254) target = $region40
        $region39: #{tpu_custom_call.1} parent=27 // pred_region
          %s257 = smul.u32 3, %s25
          %s259 = ssub.s32 1536, 1536
          %260 = vsyncadd %s250, %s259
          %s261 = smul.addr %s257, 4
          %s262 = smul.addr %s24, 12
          %s263 = sadd.s32 %s261, %s262
          %s264 = smul.addr %s263, 128
          %s265 = scalar_lea.hbm %s2, %s264
          %s266 = sshll.u32 %s253, 4
          %s267 = int_to_ptr.vmem [resolvable:$true] %s266
          %272 = dma.vmem_to_hbm [thread:$0]  %s267, 1536, %s265, %s250, 512, 512, 32
        $region40: #{tpu_custom_call.1} parent=27 // pred_fallthru
          _
      $region28: #{tpu_custom_call.1} parent=5 // pred_fallthru
        _
      %p273 = scmp.le.s32.totalorder 2, %s15
      // Predicated region
      $region41: #{tpu_custom_call.1} parent=5 // pred_check
        %p274 = pneg %p273
      $region42: #{tpu_custom_call.1} parent=5 // pred_check_branch
        %276 = sbr.rel (%p274) target = $region44
      $region43: #{tpu_custom_call.1} parent=5 // pred_region
        %s277 = ssub.s32 %s15, 2
        // Predicated region
        $region45: #{tpu_custom_call.1} parent=43 // pred_check
          %p278 = pneg %p105
        $region46: #{tpu_custom_call.1} parent=43 // pred_check_branch
          %280 = sbr.rel (%p278) target = $region48
        $region47: #{tpu_custom_call.1} parent=43 // pred_region
          %s281 = sand.u32 %s90, 1
          %s282 = scalar_lea.sflag [#allocation4], %s281
          %s283 = sand.u32 %s90, 1
          %s284 = smul.addr %s283, 96
          %s285 = scalar_lea.vmem [#allocation7], %s284
          %286 = dma.done %s282, 1536
        $region48: #{tpu_custom_call.1} parent=43 // pred_fallthru
          _
      $region44: #{tpu_custom_call.1} parent=5 // pred_fallthru
        _
    $region6: #{tpu_custom_call.1} parent=1 // loop_footer
      %s19 = sadd.s32 1, %s15
    $region7: #{tpu_custom_call.1} parent=1 // loop_footer_branch
      %14 = sbr.rel target = $region3
    $region8: #{tpu_custom_call.1} parent=1 // loop_exit
      _
    %287 = vsyncpa [#allocation3], 1
    %s288 = scalar_lea.sflag [#allocation3], 1
    %289 = vsyncpa %s288, 1
    %290 = vsyncpa [#allocation4], 1
    %s291 = scalar_lea.sflag [#allocation4], 1
    %292 = vsyncpa %s291, 1
    %293 = vsyncpa [#allocation5], 1
    %s294 = scalar_lea.sflag [#allocation5], 1
    %295 = vsyncpa %s294, 1

</llo_original>
